<compile_context>
chip_gen: v6e
topology: v6e:2x2x1
jax: 0.10.0
libtpu: 0.0.40
codegen_flags: <defaults>
</compile_context>

<pallas_src>
import functools

import jax
import jax.numpy as jnp
from jax.experimental import pallas as pl
from jax.experimental.pallas import tpu as pltpu


def _round_up(x: int, m: int) -> int:
    return ((x + m - 1) // m) * m


def _vmem_capacity_bytes() -> int:
    """Physical VMEM of the local TPU; conservative 64 MiB fallback."""
    try:
        cap = getattr(pltpu.get_tpu_info(), "vmem_capacity_bytes", None)
        if cap:
            return int(cap)
    except Exception:
        pass
    return 64 * 1024 * 1024


def _vmem_budget_bytes() -> int:
    # ~85% of physical VMEM leaves headroom for compiler-internal scratch,
    # semaphores and the f32 epilogue slab (matters most on v7x's 64 MiB).
    return int(0.85 * _vmem_capacity_bytes())


def _is_v7x() -> bool:
    try:
        return "v7" in jax.devices()[0].device_kind.lower()
    except Exception:
        return False


def _gated_highway_kernel(x_ref, w_ref, bg_ref, o_ref, *, precision):
    # x_ref : (tm, D)      tile of input rows
    # w_ref : (D, 2*tn)    paired weight block  [ Wg^T cols | Wh^T cols ]
    # bg_ref: (1, tn)      gate-bias slice
    # o_ref : (tm, tn)     output tile
    tn = o_ref.shape[-1]
    y = jnp.dot(x_ref[...], w_ref[...],
                preferred_element_type=jnp.float32, precision=precision)
    g = y[:, :tn] + bg_ref[...].astype(jnp.float32)
    h = y[:, tn:]
    o_ref[...] = (jax.nn.sigmoid(g) * h).astype(o_ref.dtype)


def prepare_gated_highway_params(w_weight, g_weight, g_bias, *, tn=None):
    """One-time parameter prep (PyTorch (out,in) layout -> packed (D, 2*n_pad)).

    Returns (w_pack, bg_pad, tn).  Column block j of w_pack holds
    [ Wg^T[:, j*tn:(j+1)*tn] | Wh^T[:, j*tn:(j+1)*tn] ] so the kernel does a
    single fused GEMM per tile.  tn == D means the resident-weight fast path.
    """
    wg_t = jnp.asarray(g_weight).T            # (D, D) gate,    x @ Wg^T
    wh_t = jnp.asarray(w_weight).T            # (D, D) highway, x @ Wh^T
    D = wg_t.shape[0]
    w_itemsize = wg_t.dtype.itemsize

    if tn is None:
        # Resident single-buffered weight if it fits with room for tiles,
        # else stream 512-wide paired column blocks.
        if D * 2 * D * w_itemsize + (8 << 20) <= _vmem_budget_bytes():
            tn = D
        else:
            tn = 512
    tn = min(int(tn), D)
    if tn < D:
        tn = _round_up(tn, 128)               # lane alignment for streamed blocks

    nb = pl.cdiv(D, tn)
    n_pad = nb * tn
    if n_pad != D:
        pad = ((0, 0), (0, n_pad - D))
        wg_t = jnp.pad(wg_t, pad)
        wh_t = jnp.pad(wh_t, pad)

    w_pack = jnp.concatenate(
        [wg_t.reshape(D, nb, 1, tn), wh_t.reshape(D, nb, 1, tn)], axis=2
    ).reshape(D, 2 * n_pad)

    bg = jnp.asarray(g_bias).reshape(1, -1)
    if n_pad != D:
        bg = jnp.pad(bg, ((0, 0), (0, n_pad - D)))
    return w_pack, bg, tn


@functools.partial(jax.jit, static_argnames=("tn", "precision"))
def gated_highway_prepared(x, w_pack, bg, *, tn, precision=None):
    """x: (..., D); w_pack/bg from prepare_gated_highway_params."""
    D = x.shape[-1]
    lead = x.shape[:-1]
    x2 = x.reshape(-1, D)
    M = x2.shape[0]

    n_pad = bg.shape[-1]
    nb = n_pad // tn

    x_itemsize = x2.dtype.itemsize
    w_itemsize = w_pack.dtype.itemsize
    budget = _vmem_budget_bytes()

    # Weight block VMEM footprint: single buffer when resident (constant
    # index_map, nb == 1), double buffer when streamed across the N axis.
    w_bufs = 1 if nb == 1 else 2
    w_block_bytes = w_bufs * D * 2 * tn * w_itemsize

    # Largest sublane-aligned row tile that fits next to the weight block.
    tm = 8
    for cand in (1024, 512, 256, 128, 64, 32, 16, 8):
        tile_bytes = (2 * cand * D * x_itemsize       # x tile (double-buffered)
                      + 2 * cand * tn * x_itemsize    # out tile (double-buffered)
                      + cand * 2 * tn * 4             # f32 (tm, 2*tn) intermediate
                      + 2 * tn * 4)                   # bias (tiny)
        if w_block_bytes + tile_bytes + (2 << 20) <= budget:
            tm = cand
            break
    tm = min(tm, _round_up(max(M, 1), 8))

    grid_m = pl.cdiv(M, tm)
    grid = (grid_m, nb)

    # v7x has 2 TensorCores: shard the M axis across them when there is work.
    m_sem = pltpu.CORE_PARALLEL if (_is_v7x() and grid_m >= 2) else pltpu.PARALLEL
    dim_sem = (m_sem, pltpu.ARBITRARY)

    if nb == 1:
        # Resident weight/bias: constant index_map -> single VMEM buffer.
        w_spec = pl.BlockSpec((D, 2 * tn), lambda i, j: (0, j),
                              pipeline_mode=pl.Buffered(1))
        b_spec = pl.BlockSpec((1, tn), lambda i, j: (0, j),
                              pipeline_mode=pl.Buffered(1))
    else:
        w_spec = pl.BlockSpec((D, 2 * tn), lambda i, j: (0, j))
        b_spec = pl.BlockSpec((1, tn), lambda i, j: (0, j))

    # Advisory cost estimate for XLA's scheduler.
    w_reads = 1 if nb == 1 else grid_m
    flops = 2 * M * D * 2 * n_pad
    bytes_accessed = (x2.size * x_itemsize
                      + w_reads * w_pack.size * w_itemsize
                      + bg.size * bg.dtype.itemsize
                      + M * D * x_itemsize)
    cost = pl.CostEstimate(flops=flops, transcendentals=M * n_pad,
                           bytes_accessed=bytes_accessed)

    need_bytes = (w_block_bytes
                  + 2 * tm * D * x_itemsize
                  + 2 * tm * tn * x_itemsize
                  + tm * 2 * tn * 4
                  + 4 * tn * 4)
    vmem_limit = int(min(budget, max(need_bytes + (8 << 20), 32 << 20)))

    kernel = functools.partial(_gated_highway_kernel, precision=precision)

    out = pl.pallas_call(
        kernel,
        out_shape=jax.ShapeDtypeStruct((M, D), x.dtype),
        grid_spec=pltpu.PrefetchScalarGridSpec(
            num_scalar_prefetch=0,
            grid=grid,
            in_specs=[
                pl.BlockSpec((tm, D), lambda i, j: (i, 0)),   # x rows
                w_spec,                                        # packed weights
                b_spec,                                        # gate bias
            ],
            out_specs=pl.BlockSpec((tm, tn), lambda i, j: (i, j)),
        ),
        compiler_params=pltpu.CompilerParams(
            dimension_semantics=dim_sem,
            vmem_limit_bytes=vmem_limit,
        ),
        cost_estimate=cost,
    )(x2, w_pack, bg)

    return out.reshape(*lead, D)


def gated_highway(x, w_weight, g_weight, g_bias, *, tn=None, precision=None):
    """Convenience wrapper taking PyTorch-layout params.

    For repeated calls, call prepare_gated_highway_params once and reuse
    gated_highway_prepared.
    """
    w_pack, bg, tn = prepare_gated_highway_params(w_weight, g_weight, g_bias, tn=tn)
    return gated_highway_prepared(x, w_pack, bg, tn=tn, precision=precision)


def gated_highway_ref(x, w_weight, g_weight, g_bias):
    """Pure-JAX reference matching the PyTorch forward."""
    h = x @ w_weight.T
    g = x @ g_weight.T + g_bias
    return jax.nn.sigmoid(g) * h


if __name__ == "__main__":
    key = jax.random.PRNGKey(0)
    k_x, k_w, k_g, k_b = jax.random.split(key, 4)

    batch, seq, dim = 2, 8, 32
    x = jax.random.normal(k_x, (batch, seq, dim), dtype=jnp.float32)

    # Deterministic synthetic params (the module's __init__ zero-init would
    # make the correctness check trivial).
    w_weight = 0.05 * jax.random.normal(k_w, (dim, dim), dtype=jnp.float32)
    g_weight = 0.05 * jax.random.normal(k_g, (dim, dim), dtype=jnp.float32)
    g_bias = 0.05 * jax.random.normal(k_b, (dim,), dtype=jnp.float32)

    out = jax.block_until_ready(gated_highway(x, w_weight, g_weight, g_bias))
    ref = gated_highway_ref(x, w_weight, g_weight, g_bias)
    assert out.shape == ref.shape
    assert jnp.allclose(out, ref, atol=1e-5, rtol=1e-5), "mismatch vs reference"

    # Zero-init path (exact module __init__): output must be exactly 0.
    z = jnp.zeros((dim, dim), jnp.float32)
    zb = jnp.zeros((dim,), jnp.float32)
    out0 = jax.block_until_ready(gated_highway(x, z, z, zb))
    assert jnp.all(out0 == 0.0), "zero-initialized module must output zeros"

    # Ragged-M path: no wrapper pad/slice — Pallas masks the partial tail block.
    x_rag = jax.random.normal(k_x, (3, 7, dim), dtype=jnp.float32)
    out_r = jax.block_until_ready(gated_highway(x_rag, w_weight, g_weight, g_bias))
    ref_r = gated_highway_ref(x_rag, w_weight, g_weight, g_bias)
    assert jnp.allclose(out_r, ref_r, atol=1e-5, rtol=1e-5), "ragged-M mismatch"

    # bf16 path: operands stay bf16 on the MXU, accumulation in f32.
    xb = x.astype(jnp.bfloat16)
    wb, gb, bb = (w_weight.astype(jnp.bfloat16), g_weight.astype(jnp.bfloat16),
                  g_bias.astype(jnp.bfloat16))
    out_b = jax.block_until_ready(gated_highway(xb, wb, gb, bb))
    ref_b = gated_highway_ref(xb.astype(jnp.float32), wb.astype(jnp.float32),
                              gb.astype(jnp.float32), bb.astype(jnp.float32))
    assert jnp.allclose(out_b.astype(jnp.float32), ref_b, atol=2e-2, rtol=2e-2), \
        "bf16 mismatch"

    # Streamed-weight (N-tiled) path, forced small so it is exercised here:
    # D=256 with tn=128 -> 2 paired column blocks per row tile.
    dim2 = 256
    k1, k2, k3, k4 = jax.random.split(jax.random.PRNGKey(1), 4)
    x_big = jax.random.normal(k1, (4, 16, dim2), dtype=jnp.float32)
    w2 = 0.05 * jax.random.normal(k2, (dim2, dim2), dtype=jnp.float32)
    g2 = 0.05 * jax.random.normal(k3, (dim2, dim2), dtype=jnp.float32)
    b2 = 0.05 * jax.random.normal(k4, (dim2,), dtype=jnp.float32)
    out2 = jax.block_until_ready(gated_highway(x_big, w2, g2, b2, tn=128))
    ref2 = gated_highway_ref(x_big, w2, g2, b2)
    assert jnp.allclose(out2, ref2, atol=1e-4, rtol=1e-4), "N-tiled mismatch"

    print("KERNEL_OK")
</pallas_src>

<mosaic_0001>
module attributes {stable_mosaic.version = 11 : i64} {
  func.func @_gated_highway_kernel(%arg0: i32, %arg1: i32, %arg2: memref<16x32xf32, #tpu.memory_space<vmem>>, %arg3: memref<32x64xf32, #tpu.memory_space<vmem>>, %arg4: memref<1x32xf32, #tpu.memory_space<vmem>>, %arg5: memref<16x32xf32, #tpu.memory_space<vmem>>) attributes {dimension_semantics = [#tpu.dimension_semantics<parallel>, #tpu.dimension_semantics<arbitrary>], iteration_bounds = array<i64: 1, 1>, scalar_prefetch = 0 : i64, scratch_operands = 0 : i64, tpu.core_type = #tpu.core_type<tc>, window_params = [{transform_indices = @transform_0, window_bounds = array<i64: 16, 32>}, {pipeline_mode = #tpu.pipeline_mode<synchronous>, transform_indices = @transform_1, window_bounds = array<i64: 32, 64>}, {pipeline_mode = #tpu.pipeline_mode<synchronous>, transform_indices = @transform_2, window_bounds = array<i64: 1, 32>}, {transform_indices = @transform_3, window_bounds = array<i64: 16, 32>}]} {
    %c0 = arith.constant 0 : index
    %c0_0 = arith.constant 0 : index
    %0 = vector.load %arg2[%c0, %c0_0] : memref<16x32xf32, #tpu.memory_space<vmem>>, vector<16x32xf32>
    %c0_1 = arith.constant 0 : index
    %c0_2 = arith.constant 0 : index
    %1 = vector.load %arg3[%c0_1, %c0_2] : memref<32x64xf32, #tpu.memory_space<vmem>>, vector<32x64xf32>
    %cst = arith.constant dense<0.000000e+00> : vector<16x64xf32>
    %2 = tpu.matmul %0, %1, %cst {dimension_numbers = #tpu.dot_dimension_numbers<[1], [0], [0], [1], [0, 0, 1, 1], [], []>} : vector<16x32xf32>, vector<32x64xf32>, vector<16x64xf32> -> vector<16x64xf32>
    %3 = vector.extract_strided_slice %2 {offsets = [0, 0], sizes = [16, 32], strides = [1, 1]} : vector<16x64xf32> to vector<16x32xf32>
    %c0_3 = arith.constant 0 : index
    %c0_4 = arith.constant 0 : index
    %4 = vector.load %arg4[%c0_3, %c0_4] : memref<1x32xf32, #tpu.memory_space<vmem>>, vector<1x32xf32>
    %5 = vector.broadcast %4 : vector<1x32xf32> to vector<16x32xf32>
    %6 = arith.addf %3, %5 : vector<16x32xf32>
    %7 = vector.extract_strided_slice %2 {offsets = [0, 32], sizes = [16, 32], strides = [1, 1]} : vector<16x64xf32> to vector<16x32xf32>
    %8 = arith.negf %6 : vector<16x32xf32>
    %9 = math.exp %8 : vector<16x32xf32>
    %cst_5 = arith.constant 1.000000e+00 : f32
    %10 = vector.broadcast %cst_5 : f32 to vector<16x32xf32>
    %11 = arith.addf %10, %9 : vector<16x32xf32>
    %12 = arith.divf %10, %11 : vector<16x32xf32>
    %13 = arith.mulf %12, %7 : vector<16x32xf32>
    %c0_6 = arith.constant 0 : index
    %c0_7 = arith.constant 0 : index
    %14 = vector.load %arg5[%c0_6, %c0_7] : memref<16x32xf32, #tpu.memory_space<vmem>>, vector<16x32xf32>
    tpu.vector_store %arg5[%c0_6, %c0_7], %13 {strides = array<i32>} : memref<16x32xf32, #tpu.memory_space<vmem>>, vector<16x32xf32>,
    return
  }
  func.func @transform_0(%arg0: i32, %arg1: i32) -> (i32, i32) {
    %c0_i32 = arith.constant 0 : i32
    %c0_i32_0 = arith.constant 0 : i32
    return %arg0, %c0_i32 : i32, i32
  }
  func.func @transform_1(%arg0: i32, %arg1: i32) -> (i32, i32) {
    %c0_i32 = arith.constant 0 : i32
    %c0_i32_0 = arith.constant 0 : i32
    return %c0_i32, %arg1 : i32, i32
  }
  func.func @transform_2(%arg0: i32, %arg1: i32) -> (i32, i32) {
    %c0_i32 = arith.constant 0 : i32
    %c0_i32_0 = arith.constant 0 : i32
    return %c0_i32, %arg1 : i32, i32
  }
  func.func @transform_3(%arg0: i32, %arg1: i32) -> (i32, i32) {
    %c0_i32 = arith.constant 0 : i32
    return %arg0, %arg1 : i32, i32
  }
}

</mosaic_0001>

<llo_original>
// kernel: gated_highway_prepared.1
$region0: #{gated_highway_prepared.1}
  #allocation0 [shape = 'u32[]', space=smem, size = 0x4, offset = 0x4, fixed_abs, tag = 'smem constant byte address 0x4 - core index']
  #allocation1 [shape = 'u32[144,128]{1,0:T(1,128)}', space=vmem, size = 0x12000, scoped, tag = 'internal scratch']
  %s0 = inlined_call_operand.hbm [shape: f32[16,32], index: 0, kind: input, shape index: {}]
  %s1 = inlined_call_operand.hbm [shape: f32[32,64], index: 1, kind: input, shape index: {}]
  %s2 = inlined_call_operand.vmem [shape: f32[1,32], index: 2, kind: input, shape index: {}]
  %s3 = inlined_call_operand.hbm [shape: f32[16,32], index: 3, kind: output, shape index: {}]
  %s4 = sld [smem:[#allocation0]]
  $region30: #{gated_highway_prepared.1} parent=0
    _
  %s6 = ssub.s32 1, %s4
  %s7 = scalar_select 0, %s6, %s4
  $region1: #{gated_highway_prepared.1} parent=0
    #allocation2 [shape = 'u8[8192]{0}', space=vmem, size = 0x2000, scoped, tag = 'input window, operand 0, single buffered']
    #allocation3 [shape = 's32[1]{0}', space=sflag, size = 0x4, scoped, tag = 'scoped memory for gated_highway_prepared.1']
    #allocation4 [shape = 's32[1]{0}', space=sflag, size = 0x4, scoped, tag = 'scoped memory for gated_highway_prepared.1']
    #allocation5 [shape = 'u8[16384]{0}', space=vmem, size = 0x4000, scoped, tag = 'input window, operand 1, single buffered']
    #allocation6 [shape = 's32[1]{0}', space=sflag, size = 0x4, scoped, tag = 'scoped memory for gated_highway_prepared.1']
    #allocation7 [shape = 'u8[8192]{0}', space=vmem, size = 0x2000, scoped, tag = 'output window, operand 0, single buffered']
    %8 = vsyncpa [#allocation3], 0
    %9 = vsyncpa [#allocation6], 0
    %10 = vsyncpa [#allocation4], 0
    // Predicated region
    $region2: #{gated_highway_prepared.1} parent=1 // pred_check
      _
    $region3: #{gated_highway_prepared.1} parent=1 // pred_check_branch
      %12 = sbr.rel (0) target = $region5
    $region4: #{gated_highway_prepared.1} parent=1 // pred_region
      %s14 = ssub.s32 256, 256
      %15 = vsyncadd [#allocation3], %s14
      %s16 = sshll.u32 [#allocation2], 4
      %s17 = int_to_ptr.vmem [resolvable:$true] %s16
      %22 = dma.hbm_to_vmem [thread:$0]  %s0, 256, %s17, [#allocation3], 128, 128, 8
    $region5: #{gated_highway_prepared.1} parent=1 // pred_fallthru
      _
    // Predicated region
    $region6: #{gated_highway_prepared.1} parent=1 // pred_check
      _
    $region7: #{gated_highway_prepared.1} parent=1 // pred_check_branch
      %24 = sbr.rel (0) target = $region9
    $region8: #{gated_highway_prepared.1} parent=1 // pred_region
      %s26 = ssub.s32 512, 512
      %27 = vsyncadd [#allocation6], %s26
      %s28 = sshll.u32 [#allocation5], 4
      %s29 = int_to_ptr.vmem [resolvable:$true] %s28
      %34 = dma.hbm_to_vmem [thread:$0]  %s1, 512, %s29, [#allocation6], 128, 128, 8
    $region9: #{gated_highway_prepared.1} parent=1 // pred_fallthru
      _
    // Predicated region
    $region10: #{gated_highway_prepared.1} parent=1 // pred_check
      _
    $region11: #{gated_highway_prepared.1} parent=1 // pred_check_branch
      %36 = sbr.rel (0) target = $region13
    $region12: #{gated_highway_prepared.1} parent=1 // pred_region
      _
    $region13: #{gated_highway_prepared.1} parent=1 // pred_fallthru
      _
    // Predicated region
    $region14: #{gated_highway_prepared.1} parent=1 // pred_check
      _
    $region15: #{gated_highway_prepared.1} parent=1 // pred_check_branch
      %38 = sbr.rel (0) target = $region17
    $region16: #{gated_highway_prepared.1} parent=1 // pred_region
      %39 = dma.done [#allocation3], 256
    $region17: #{gated_highway_prepared.1} parent=1 // pred_fallthru
      _
    // Predicated region
    $region18: #{gated_highway_prepared.1} parent=1 // pred_check
      _
    $region19: #{gated_highway_prepared.1} parent=1 // pred_check_branch
      %41 = sbr.rel (0) target = $region21
    $region20: #{gated_highway_prepared.1} parent=1 // pred_region
      %42 = dma.done [#allocation6], 512
    $region21: #{gated_highway_prepared.1} parent=1 // pred_fallthru
      _
    %v43 = vld [vmem:[#allocation2] sm:$0xff]
    %v44 = vld [vmem:[#allocation2 + $0x8] sm:$0xff]
    %v45 = vld [vmem:[#allocation5] sm:$0xff]
    %v46 = vld [vmem:[#allocation5 + $0x8] sm:$0xff]
    %v47 = vld [vmem:[#allocation5 + $0x10] sm:$0xff]
    %v48 = vld [vmem:[#allocation5 + $0x18] sm:$0xff]
    %vm49 = vcmask 261120
    %v51 = vsel %vm49, %v43, 0
    %v54 = vsel %vm49, %v44, 0
    %56 = vmatprep.subr.mxu0 0.0
    %57 = vmatpush1.msra.mxu0 0.0
    %58 = vmatprep.subr.mxu0 0.0
    %59 = vmatpush1.msra.mxu0 0.0
    %60 = vmatprep.subr.mxu0 0.0
    %61 = vmatpush1.msra.mxu0 0.0
    %62 = vmatprep.subr.mxu0 0.0
    %63 = vmatpush1.msra.mxu0 0.0
    %64 = vmatprep.subr.mxu0 0.0
    %65 = vmatpush1.msra.mxu0 0.0
    %66 = vmatprep.subr.mxu0 0.0
    %67 = vmatpush1.msra.mxu0 0.0
    %68 = vmatprep.subr.mxu0 0.0
    %69 = vmatpush1.msra.mxu0 0.0
    %70 = vmatprep.subr.mxu0 0.0
    %71 = vmatpush1.msra.mxu0 0.0
    %72 = vmatprep.subr.mxu0 0.0
    %73 = vmatpush1.msra.mxu0 0.0
    %74 = vmatprep.subr.mxu0 0.0
    %75 = vmatpush1.msra.mxu0 0.0
    %76 = vmatprep.subr.mxu0 0.0
    %77 = vmatpush1.msra.mxu0 0.0
    %78 = vmatprep.subr.mxu0 0.0
    %79 = vmatpush1.msra.mxu0 0.0
    %80 = vmatprep.subr.mxu0 0.0
    %81 = vmatpush1.msra.mxu0 %v48
    %82 = vmatprep.subr.mxu0 0.0
    %83 = vmatpush1.msra.mxu0 %v47
    %84 = vmatprep.subr.mxu0 0.0
    %85 = vmatpush1.msra.mxu0 %v46
    %86 = vmatprep.subr.mxu0 0.0
    %87 = vmatpush1.msra.mxu0 %v45
    %88 = vmatprep.subr.mxu0 0.0
    %89 = vmatpush2.msra.mxu0 0.0
    %90 = vmatprep.subr.mxu0 0.0
    %91 = vmatpush2.msra.mxu0 0.0
    %92 = vmatprep.subr.mxu0 0.0
    %93 = vmatpush2.msra.mxu0 0.0
    %94 = vmatprep.subr.mxu0 0.0
    %95 = vmatpush2.msra.mxu0 0.0
    %96 = vmatprep.subr.mxu0 0.0
    %97 = vmatpush2.msra.mxu0 0.0
    %98 = vmatprep.subr.mxu0 0.0
    %99 = vmatpush2.msra.mxu0 0.0
    %100 = vmatprep.subr.mxu0 0.0
    %101 = vmatpush2.msra.mxu0 0.0
    %102 = vmatprep.subr.mxu0 0.0
    %103 = vmatpush2.msra.mxu0 0.0
    %104 = vmatprep.subr.mxu0 0.0
    %105 = vmatpush2.msra.mxu0 0.0
    %106 = vmatprep.subr.mxu0 0.0
    %107 = vmatpush2.msra.mxu0 0.0
    %108 = vmatprep.subr.mxu0 0.0
    %109 = vmatpush2.msra.mxu0 0.0
    %110 = vmatprep.subr.mxu0 0.0
    %111 = vmatpush2.msra.mxu0 0.0
    %112 = vmatprep.subr.mxu0 0.0
    %113 = vmatpush2.msra.mxu0 0.0
    %114 = vmatprep.subr.mxu0 0.0
    %115 = vmatpush2.msra.mxu0 0.0
    %116 = vmatprep.subr.mxu0 0.0
    %117 = vmatpush2.msra.mxu0 0.0
    %118 = vmatprep.subr.mxu0 0.0
    %119 = vmatpush2.msra.mxu0 0.0
    %120 = vmatprep.mubr.f32.mxu0 0.0
    %121 = vmatmul.mubr.f32.gmra.mxu0 %v51
    %v122 = vpop.f32.mrf.mxu0
    %v123 = vadd.f32 0.0, %v122
    %v124 = vpop.f32.mrf.mxu0
    %125 = vmatprep.mubr.f32.mxu0 0.0
    %126 = vmatmul.mubr.f32.gmra.mxu0 %v54
    %v127 = vpop.f32.mrf.mxu0
    %v128 = vadd.f32 0.0, %v127
    %v129 = vpop.f32.mrf.mxu0
    %130 = vdwg.mxu0
    %v131 = vld [vmem:[%s2] sm:$0x1]
    %v133 = vlaneseq
    %v134 = vshrl.u32 %v133, 7
    %v135 = vsub.s32 0, %v134
    %v136 = vrot.slane %v131, %v135
    %v138 = vadd.f32 %v123, %v136
    %v139 = vadd.f32 %v128, %v136
    %v140 = vxor.u32 %v138, 2147483648
    %v141 = vxor.u32 %v139, 2147483648
    %v142 = vmul.f32 %v140, 1.442695
    %v143 = vpow.pop %v142
    %v144 = vmul.f32 %v141, 1.442695
    %v145 = vpow.pop %v144
    %v146 = vadd.f32 %v143, 1.0
    %v147 = vadd.f32 %v145, 1.0
    %v148 = vrcp.pop %v146
    %v149 = vmul.f32 1.0, %v148
    %v150 = vrcp.pop %v147
    %v151 = vmul.f32 1.0, %v150
    %154 = vrot.lane.b32.xlu0 %v123, 96
    %v155 = vpop.permute.xlu0 %154
    %156 = vrot.lane.b32.xlu0 %v128, 96
    %v157 = vpop.permute.xlu0 %156
    %v160 = vmul.f32 %v149, %v155
    %v161 = vmul.f32 %v151, %v157
    %162 = vst.msk [vmem:[#allocation7] sm:$0xff] %vm49, %v160
    %163 = vst.msk [vmem:[#allocation7 + $0x8] sm:$0xff] %vm49, %v161
    // Predicated region
    $region22: #{gated_highway_prepared.1} parent=1 // pred_check
      _
    $region23: #{gated_highway_prepared.1} parent=1 // pred_check_branch
      %165 = sbr.rel (0) target = $region25
    $region24: #{gated_highway_prepared.1} parent=1 // pred_region
      %s167 = ssub.s32 256, 256
      %168 = vsyncadd [#allocation4], %s167
      %s169 = sshll.u32 [#allocation7], 4
      %s170 = int_to_ptr.vmem [resolvable:$true] %s169
      %175 = dma.vmem_to_hbm [thread:$0]  %s170, 256, %s3, [#allocation4], 128, 128, 8
    $region25: #{gated_highway_prepared.1} parent=1 // pred_fallthru
      _
    // Predicated region
    $region26: #{gated_highway_prepared.1} parent=1 // pred_check
      _
    $region27: #{gated_highway_prepared.1} parent=1 // pred_check_branch
      %177 = sbr.rel (0) target = $region29
    $region28: #{gated_highway_prepared.1} parent=1 // pred_region
      %178 = dma.done [#allocation4], 256
    $region29: #{gated_highway_prepared.1} parent=1 // pred_fallthru
      _
    %179 = vsyncpa [#allocation3], 1
    %180 = vsyncpa [#allocation6], 1
    %181 = vsyncpa [#allocation4], 1

</llo_original>
